<compile_context>
chip_gen: v5e
topology: v5e:2x2
jax: 0.10.0
libtpu: 0.0.40
codegen_flags: <defaults>
</compile_context>

<pallas_src>
import functools

import jax
import jax.numpy as jnp
from jax.experimental import pallas as pl
from jax.experimental.pallas import tpu as pltpu


def _bert_emb_kernel(ids_ref,       # SMEM (B*S,) int32   (scalar prefetch)
                     wtab_hbm,      # HBM  (V, H)         (pl.ANY; manual row gather)
                     ptab_ref,      # VMEM (S, H)         resident position rows
                     gamma_ref,     # VMEM (1, H)
                     beta_ref,      # VMEM (1, H)
                     out_ref,       # VMEM (TS, H) -> embeddings[b, st*TS:(st+1)*TS]
                     wemb_out_ref,  # VMEM (TS, H) -> words_embeddings[b, ...]
                     wbuf,          # VMEM (TS, H) scratch: gathered word rows
                     sems,          # DMA semaphores, one per chunk
                     *, seq_len, seq_tile, chunk, eps):
    b = pl.program_id(0)
    st = pl.program_id(1)
    s0 = st * seq_tile
    base = b * seq_len + s0
    n_chunks = seq_tile // chunk
    aligned = (chunk % 8 == 0)        # static: chunk%8==0 implies seq_tile%8==0 too

    def _al(v):
        return pl.multiple_of(v, 8) if aligned else v

    # ---- issue every row-gather DMA up front (tight loop, nothing else) ----
    # Chunk c's row copies all signal sems[c].
    @pl.loop(0, n_chunks)
    def _issue(c):
        @pl.loop(0, chunk)
        def _row(j):
            i = c * chunk + j
            rid = ids_ref[base + i]
            pltpu.make_async_copy(
                wtab_hbm.at[pl.ds(rid, 1)], wbuf.at[pl.ds(i, 1)], sems.at[c]
            ).start()

    H = gamma_ref.shape[1]
    gamma = jnp.broadcast_to(gamma_ref[...].astype(jnp.float32), (chunk, H))
    beta = jnp.broadcast_to(beta_ref[...].astype(jnp.float32), (chunk, H))

    # ---- consume chunk-by-chunk so later DMAs hide under earlier compute ---
    @pl.loop(0, n_chunks)
    def _compute(c):
        r0 = _al(c * chunk)
        # One aggregated wait: `chunk` identically-sized row copies landed on
        # sems[c]; a single descriptor spanning the chunk drains them all.
        pltpu.make_async_copy(
            wtab_hbm.at[pl.ds(0, chunk)], wbuf.at[pl.ds(r0, chunk)], sems.at[c]
        ).wait()

        wemb = wbuf[pl.ds(r0, chunk), :].astype(jnp.float32)
        pemb = ptab_ref[pl.ds(_al(s0 + c * chunk), chunk), :].astype(jnp.float32)
        x = wemb + pemb

        # LayerNorm over hidden dim (biased variance, like torch.nn.LayerNorm);
        # f32 math on the VPU regardless of table dtype.
        mean = jnp.mean(x, axis=-1, keepdims=True)
        d = x - mean
        var = jnp.mean(d * d, axis=-1, keepdims=True)
        y = d * jax.lax.rsqrt(var + eps) * gamma + beta

        # TODO(synk): nn.Dropout is identity in eval mode; training-time dropout
        # (pltpu.prng_* + mask) is not implemented here.
        out_ref[pl.ds(r0, chunk), :] = y.astype(out_ref.dtype)
        wemb_out_ref[pl.ds(r0, chunk), :] = wemb.astype(wemb_out_ref.dtype)


def _pick_tile(n, target):
    """Largest t <= target with n % t == 0 and t % 8 == 0; else n itself."""
    if n <= target:
        return n
    for t in range(target, 7, -1):
        if n % t == 0 and t % 8 == 0:
            return t
    return n


def bert_embeddings(input_ids, word_table, pos_table, gamma, beta, eps=1e-12):
    """Pallas implementation of BertEmbeddings.forward(input_ids, None).

    Returns (embeddings, words_embeddings), both [B, S, H] in the embedding
    table dtype.  Assumes S <= max_content_len and default position_ids.
    """
    B, S = input_ids.shape
    V, H = word_table.shape
    assert pos_table.shape[0] >= S, "sequence longer than max_content_len"

    TS = _pick_tile(S, 512)            # sequence tile (rows per grid step)
    CHUNK = _pick_tile(TS, 128)        # rows per aggregated-wait chunk
    assert S % TS == 0 and TS % CHUNK == 0
    n_chunks = TS // CHUNK

    ids_flat = input_ids.reshape(B * S).astype(jnp.int32)   # 1-D SMEM: no lane padding
    pos_rows = pos_table[:S]           # only rows used by default position_ids
    gamma2 = gamma.reshape(1, H)
    beta2 = beta.reshape(1, H)

    out_dtype = word_table.dtype       # matches nn.Embedding / LayerNorm output dtype

    kernel = functools.partial(
        _bert_emb_kernel, seq_len=S, seq_tile=TS, chunk=CHUNK, eps=float(eps))

    grid_spec = pltpu.PrefetchScalarGridSpec(
        num_scalar_prefetch=1,                                    # ids -> SMEM
        grid=(B, S // TS),
        in_specs=[
            pl.BlockSpec(memory_space=pl.ANY),                    # word table stays in HBM
            pl.BlockSpec((S, H), lambda b, st, ids: (0, 0)),      # resident position rows
            pl.BlockSpec((1, H), lambda b, st, ids: (0, 0)),      # LayerNorm gamma
            pl.BlockSpec((1, H), lambda b, st, ids: (0, 0)),      # LayerNorm beta
        ],
        out_specs=[
            pl.BlockSpec((None, TS, H), lambda b, st, ids: (b, st, 0)),  # embeddings
            pl.BlockSpec((None, TS, H), lambda b, st, ids: (b, st, 0)),  # words_embeddings
        ],
        scratch_shapes=[
            pltpu.VMEM((TS, H), word_table.dtype),   # gathered word rows
            pltpu.SemaphoreType.DMA((n_chunks,)),    # one semaphore per chunk
        ],
    )

    out_shapes = (
        jax.ShapeDtypeStruct((B, S, H), out_dtype),
        jax.ShapeDtypeStruct((B, S, H), out_dtype),
    )

    # Honest scoped-VMEM budget: two double-buffered outputs + gather scratch
    # + resident position table + gamma/beta, with 2x headroom, capped below
    # v7x's 64 MiB physical VMEM.
    i_out = jnp.dtype(out_dtype).itemsize
    i_tab = jnp.dtype(word_table.dtype).itemsize
    i_pos = jnp.dtype(pos_table.dtype).itemsize
    need = (2 * 2 * TS * H * i_out        # 2 outputs x 2 pipeline buffers
            + TS * H * i_tab              # wbuf scratch
            + 2 * S * H * i_pos           # resident pos table (2 buffers)
            + 2 * 2 * H * 4)              # gamma / beta
    vmem_limit = int(min(max(2 * need, 4 << 20), 48 << 20))

    return pl.pallas_call(
        kernel,
        grid_spec=grid_spec,
        out_shape=out_shapes,
        compiler_params=pltpu.CompilerParams(
            dimension_semantics=("parallel", "parallel"),
            vmem_limit_bytes=vmem_limit),
    )(ids_flat, word_table, pos_rows, gamma2, beta2)


def _reference(input_ids, word_table, pos_table, gamma, beta, eps):
    B, S = input_ids.shape
    wemb = word_table[input_ids].astype(jnp.float32)                 # (B, S, H)
    pemb = pos_table[jnp.arange(S)][None, :, :].astype(jnp.float32)  # (1, S, H)
    x = wemb + pemb
    mean = jnp.mean(x, axis=-1, keepdims=True)
    var = jnp.mean((x - mean) ** 2, axis=-1, keepdims=True)
    y = (x - mean) / jnp.sqrt(var + eps) * gamma + beta
    return y, wemb


if __name__ == "__main__":
    # Small config consistent with the module's __init__:
    vocab_size = 64
    hidden_dim = 32
    max_content_len = 16
    pad_idx = 0
    eps = 1e-12
    B, S = 2, 8

    key = jax.random.PRNGKey(0)
    k_ids, k_w, k_p = jax.random.split(key, 3)

    input_ids = jax.random.randint(k_ids, (B, S), 0, vocab_size, dtype=jnp.int32)

    word_table = 0.02 * jax.random.normal(k_w, (vocab_size, hidden_dim), jnp.float32)
    # nn.Embedding padding_idx: that row's embedding is zero.
    word_table = word_table.at[pad_idx].set(0.0)
    pos_table = 0.02 * jax.random.normal(k_p, (max_content_len, hidden_dim), jnp.float32)
    gamma = jnp.ones((hidden_dim,), jnp.float32)
    beta = jnp.zeros((hidden_dim,), jnp.float32)

    emb, wemb = bert_embeddings(input_ids, word_table, pos_table, gamma, beta, eps)
    jax.block_until_ready((emb, wemb))

    emb_ref, wemb_ref = _reference(input_ids, word_table, pos_table, gamma, beta, eps)
    assert emb.shape == (B, S, hidden_dim) and wemb.shape == (B, S, hidden_dim)
    assert jnp.allclose(emb, emb_ref, atol=1e-5, rtol=1e-5)
    assert jnp.allclose(wemb, wemb_ref, atol=1e-6, rtol=1e-6)

    print("KERNEL_OK")
</pallas_src>

<mosaic_0001>
module attributes {stable_mosaic.version = 11 : i64} {
  func.func @_bert_emb_kernel(%arg0: i32, %arg1: i32, %arg2: memref<16xi32, #tpu.memory_space<smem>>, %arg3: memref<64x32xf32, #tpu.memory_space<any>>, %arg4: memref<8x32xf32, #tpu.memory_space<vmem>>, %arg5: memref<1x32xf32, #tpu.memory_space<vmem>>, %arg6: memref<1x32xf32, #tpu.memory_space<vmem>>, %arg7: memref<1x8x32xf32, #tpu.memory_space<vmem>>, %arg8: memref<1x8x32xf32, #tpu.memory_space<vmem>>, %arg9: memref<8x32xf32, #tpu.memory_space<vmem>>, %arg10: memref<1x!tpu.dma_semaphore, #tpu.memory_space<semaphore_mem>>) attributes {dimension_semantics = [#tpu.dimension_semantics<parallel>, #tpu.dimension_semantics<parallel>], iteration_bounds = array<i64: 2, 1>, scalar_prefetch = 1 : i64, scratch_operands = 2 : i64, tpu.core_type = #tpu.core_type<tc>, window_params = [{}, {pipeline_mode = #tpu.pipeline_mode<synchronous>, transform_indices = @transform_1, window_bounds = array<i64: 8, 32>}, {pipeline_mode = #tpu.pipeline_mode<synchronous>, transform_indices = @transform_2, window_bounds = array<i64: 1, 32>}, {pipeline_mode = #tpu.pipeline_mode<synchronous>, transform_indices = @transform_3, window_bounds = array<i64: 1, 32>}, {transform_indices = @transform_4, window_bounds = array<i64: 1, 8, 32>}, {transform_indices = @transform_5, window_bounds = array<i64: 1, 8, 32>}]} {
    %c8_i32 = arith.constant 8 : i32
    %0 = arith.muli %arg1, %c8_i32 : i32
    %c8_i32_0 = arith.constant 8 : i32
    %1 = arith.muli %arg0, %c8_i32_0 : i32
    %2 = arith.addi %1, %0 : i32
    %c0_i32 = arith.constant 0 : i32
    %c1_i32 = arith.constant 1 : i32
    %3 = arith.muli %c0_i32, %c1_i32 : i32
    %c0_i32_1 = arith.constant 0 : i32
    %4 = arith.addi %c0_i32_1, %3 : i32
    %c0_i32_2 = arith.constant 0 : i32
    %c8_i32_3 = arith.constant 8 : i32
    %5 = arith.addi %c0_i32_2, %c8_i32_3 : i32
    %c1_i32_4 = arith.constant 1 : i32
    scf.for %arg11 = %c0_i32_2 to %5 step %c1_i32_4  : i32 {
      %c1_i32_29 = arith.constant 1 : i32
      %54 = arith.muli %arg11, %c1_i32_29 : i32
      %c0_i32_30 = arith.constant 0 : i32
      %55 = arith.addi %c0_i32_30, %54 : i32
      %c8_i32_31 = arith.constant 8 : i32
      %56 = arith.muli %4, %c8_i32_31 : i32
      %57 = arith.addi %56, %55 : i32
      %58 = arith.addi %2, %57 : i32
      %59 = arith.index_cast %58 : i32 to index
      %60 = memref.load %arg2[%59] : memref<16xi32, #tpu.memory_space<smem>>
      %c0_i32_32 = arith.constant 0 : i32
      %61 = tpu.memref_slice %arg3[%60, %c0_i32_32] : memref<64x32xf32, #tpu.memory_space<any>> -> memref<1x32xf32, #tpu.memory_space<any>>
      %c0_i32_33 = arith.constant 0 : i32
      %62 = tpu.memref_slice %arg9[%57, %c0_i32_33] : memref<8x32xf32, #tpu.memory_space<vmem>> -> memref<1x32xf32, #tpu.memory_space<vmem>>
      %63 = tpu.memref_slice %arg10[%4] : memref<1x!tpu.dma_semaphore, #tpu.memory_space<semaphore_mem>> -> memref<1x!tpu.dma_semaphore, #tpu.memory_space<semaphore_mem>>
      %64 = tpu.memref_squeeze %63 : memref<1x!tpu.dma_semaphore, #tpu.memory_space<semaphore_mem>> -> memref<!tpu.dma_semaphore, #tpu.memory_space<semaphore_mem>>
      tpu.enqueue_dma source(%61 : memref<1x32xf32, #tpu.memory_space<any>>) target(%62 : memref<1x32xf32, #tpu.memory_space<vmem>>) target_semaphore(%64 : memref<!tpu.dma_semaphore, #tpu.memory_space<semaphore_mem>>)
    }
    %c8_i32_5 = arith.constant 8 : i32
    %c1_i32_6 = arith.constant 1 : i32
    %c0 = arith.constant 0 : index
    %c0_7 = arith.constant 0 : index
    %6 = vector.load %arg5[%c0, %c0_7] : memref<1x32xf32, #tpu.memory_space<vmem>>, vector<1x32xf32>
    %7 = vector.shape_cast %6 : vector<1x32xf32> to vector<1x32xf32>
    %8 = vector.broadcast %7 : vector<1x32xf32> to vector<8x32xf32>
    %c0_8 = arith.constant 0 : index
    %c0_9 = arith.constant 0 : index
    %9 = vector.load %arg6[%c0_8, %c0_9] : memref<1x32xf32, #tpu.memory_space<vmem>>, vector<1x32xf32>
    %10 = vector.shape_cast %9 : vector<1x32xf32> to vector<1x32xf32>
    %11 = vector.broadcast %10 : vector<1x32xf32> to vector<8x32xf32>
    %c0_i32_10 = arith.constant 0 : i32
    %c1_i32_11 = arith.constant 1 : i32
    %12 = arith.muli %c0_i32_10, %c1_i32_11 : i32
    %c0_i32_12 = arith.constant 0 : i32
    %13 = arith.addi %c0_i32_12, %12 : i32
    %c8_i32_13 = arith.constant 8 : i32
    %14 = arith.muli %13, %c8_i32_13 : i32
    %15 = tpu.assume_multiple %14, 8 : i32
    %c0_i32_14 = arith.constant 0 : i32
    %c0_i32_15 = arith.constant 0 : i32
    %16 = tpu.memref_slice %arg3[%c0_i32_14, %c0_i32_15] : memref<64x32xf32, #tpu.memory_space<any>> -> memref<8x32xf32, #tpu.memory_space<any>>
    %c0_i32_16 = arith.constant 0 : i32
    %17 = tpu.memref_slice %arg9[%15, %c0_i32_16] : memref<8x32xf32, #tpu.memory_space<vmem>> -> memref<8x32xf32, #tpu.memory_space<vmem>>
    %18 = tpu.memref_slice %arg10[%13] : memref<1x!tpu.dma_semaphore, #tpu.memory_space<semaphore_mem>> -> memref<1x!tpu.dma_semaphore, #tpu.memory_space<semaphore_mem>>
    %19 = tpu.memref_squeeze %18 : memref<1x!tpu.dma_semaphore, #tpu.memory_space<semaphore_mem>> -> memref<!tpu.dma_semaphore, #tpu.memory_space<semaphore_mem>>
    tpu.wait_dma2 semaphore(%19 : memref<!tpu.dma_semaphore, #tpu.memory_space<semaphore_mem>>) src(%16 : memref<8x32xf32, #tpu.memory_space<any>>) dst(%17 : memref<8x32xf32, #tpu.memory_space<vmem>>)
    %20 = arith.index_cast %15 : i32 to index
    %c0_17 = arith.constant 0 : index
    %21 = vector.load %arg9[%20, %c0_17] : memref<8x32xf32, #tpu.memory_space<vmem>>, vector<8x32xf32>
    %c8_i32_18 = arith.constant 8 : i32
    %22 = arith.muli %13, %c8_i32_18 : i32
    %23 = arith.addi %0, %22 : i32
    %24 = tpu.assume_multiple %23, 8 : i32
    %25 = arith.index_cast %24 : i32 to index
    %c0_19 = arith.constant 0 : index
    %26 = vector.load %arg4[%25, %c0_19] : memref<8x32xf32, #tpu.memory_space<vmem>>, vector<8x32xf32>
    %27 = arith.addf %21, %26 : vector<8x32xf32>
    %cst = arith.constant dense<0.000000e+00> : vector<8xf32>
    %28 = vector.multi_reduction <add>, %27, %cst [1] : vector<8x32xf32> to vector<8xf32>
    %29 = vector.shape_cast %28 : vector<8xf32> to vector<8x1xf32>
    %cst_20 = arith.constant 3.200000e+01 : f32
    %30 = vector.broadcast %cst_20 : f32 to vector<8x1xf32>
    %31 = arith.divf %29, %30 : vector<8x1xf32>
    %32 = vector.broadcast %31 : vector<8x1xf32> to vector<8x32xf32>
    %33 = arith.subf %27, %32 : vector<8x32xf32>
    %34 = arith.mulf %33, %33 : vector<8x32xf32>
    %cst_21 = arith.constant dense<0.000000e+00> : vector<8xf32>
    %35 = vector.multi_reduction <add>, %34, %cst_21 [1] : vector<8x32xf32> to vector<8xf32>
    %36 = vector.shape_cast %35 : vector<8xf32> to vector<8x1xf32>
    %cst_22 = arith.constant 3.200000e+01 : f32
    %37 = vector.broadcast %cst_22 : f32 to vector<8x1xf32>
    %38 = arith.divf %36, %37 : vector<8x1xf32>
    %cst_23 = arith.constant 9.99999996E-13 : f32
    %39 = vector.broadcast %cst_23 : f32 to vector<8x1xf32>
    %40 = arith.addf %38, %39 : vector<8x1xf32>
    %41 = math.rsqrt %40 : vector<8x1xf32>
    %42 = vector.broadcast %41 : vector<8x1xf32> to vector<8x32xf32>
    %43 = arith.mulf %33, %42 : vector<8x32xf32>
    %44 = arith.mulf %43, %8 : vector<8x32xf32>
    %45 = arith.addf %44, %11 : vector<8x32xf32>
    %c0_24 = arith.constant 0 : index
    %46 = arith.index_cast %15 : i32 to index
    %c0_25 = arith.constant 0 : index
    %47 = vector.load %arg7[%c0_24, %46, %c0_25] : memref<1x8x32xf32, #tpu.memory_space<vmem>>, vector<1x8x32xf32>
    %48 = vector.shape_cast %47 : vector<1x8x32xf32> to vector<8x32xf32>
    %49 = vector.shape_cast %45 : vector<8x32xf32> to vector<1x8x32xf32>
    tpu.vector_store %arg7[%c0_24, %46, %c0_25], %49 {strides = array<i32>} : memref<1x8x32xf32, #tpu.memory_space<vmem>>, vector<1x8x32xf32>,
    %c0_26 = arith.constant 0 : index
    %50 = arith.index_cast %15 : i32 to index
    %c0_27 = arith.constant 0 : index
    %51 = vector.load %arg8[%c0_26, %50, %c0_27] : memref<1x8x32xf32, #tpu.memory_space<vmem>>, vector<1x8x32xf32>
    %52 = vector.shape_cast %51 : vector<1x8x32xf32> to vector<8x32xf32>
    %53 = vector.shape_cast %21 : vector<8x32xf32> to vector<1x8x32xf32>
    tpu.vector_store %arg8[%c0_26, %50, %c0_27], %53 {strides = array<i32>} : memref<1x8x32xf32, #tpu.memory_space<vmem>>, vector<1x8x32xf32>,
    %c1_i32_28 = arith.constant 1 : i32
    return
  }
  func.func @transform_1(%arg0: i32, %arg1: i32, %arg2: memref<16xi32, #tpu.memory_space<smem>>) -> (i32, i32) {
    %c0_i32 = arith.constant 0 : i32
    %c0_i32_0 = arith.constant 0 : i32
    %c0_i32_1 = arith.constant 0 : i32
    return %c0_i32, %c0_i32_0 : i32, i32
  }
  func.func @transform_2(%arg0: i32, %arg1: i32, %arg2: memref<16xi32, #tpu.memory_space<smem>>) -> (i32, i32) {
    %c0_i32 = arith.constant 0 : i32
    %c0_i32_0 = arith.constant 0 : i32
    %c0_i32_1 = arith.constant 0 : i32
    return %c0_i32, %c0_i32_0 : i32, i32
  }
  func.func @transform_3(%arg0: i32, %arg1: i32, %arg2: memref<16xi32, #tpu.memory_space<smem>>) -> (i32, i32) {
    %c0_i32 = arith.constant 0 : i32
    %c0_i32_0 = arith.constant 0 : i32
    %c0_i32_1 = arith.constant 0 : i32
    return %c0_i32, %c0_i32_0 : i32, i32
  }
  func.func @transform_4(%arg0: i32, %arg1: i32, %arg2: memref<16xi32, #tpu.memory_space<smem>>) -> (i32, i32, i32) {
    %c0_i32 = arith.constant 0 : i32
    %c0_i32_0 = arith.constant 0 : i32
    return %arg0, %arg1, %c0_i32 : i32, i32, i32
  }
  func.func @transform_5(%arg0: i32, %arg1: i32, %arg2: memref<16xi32, #tpu.memory_space<smem>>) -> (i32, i32, i32) {
    %c0_i32 = arith.constant 0 : i32
    %c0_i32_0 = arith.constant 0 : i32
    return %arg0, %arg1, %c0_i32 : i32, i32, i32
  }
}

</mosaic_0001>

<llo_original>
// kernel: tpu_custom_call.1
$region0: #{tpu_custom_call.1}
  #allocation0 [shape = 'u32[]', space=smem, size = 0x4, offset = 0x4, fixed_abs, tag = 'smem constant byte address 0x4 - core index']
  #allocation1 [shape = 'u32[72,128]{1,0:T(1,128)}', space=vmem, size = 0x9000, scoped, tag = 'internal scratch']
  #allocation2 [shape = 'f32[8,32]{1,0:T(8,128)}', space=vmem, size = 0x1000, scoped, tag = 'scratch operand']
  #allocation3 [shape = 's32[1]{0}', space=sflag, size = 0x4, scoped, tag = 'scratch operand']
  #allocation4 [shape = 's32[1]{0}', space=sflag, size = 0x4, scoped, tag = 'scoped memory for tpu_custom_call.1']
  #allocation5 [shape = 'u8[512]{0}', space=smem, size = 0x200, scoped, tag = 'prefetched SMEM operand 0']
  #allocation10 [shape = 's32[]', space=sflag, size = 0x4, offset = 0, fixed_abs, tag = 'sflag constant byte address 0x0 - dummy sync flag']
  %s0 = inlined_call_operand.vmem [shape: s32[16], index: 0, kind: input, shape index: {}]
  %s1 = inlined_call_operand.vmem [shape: f32[64,32], index: 1, kind: input, shape index: {}]
  %s2 = inlined_call_operand.vmem [shape: f32[8,32], index: 2, kind: input, shape index: {}]
  %s3 = inlined_call_operand.vmem [shape: f32[1,32], index: 3, kind: input, shape index: {}]
  %s4 = inlined_call_operand.vmem [shape: f32[1,32], index: 4, kind: input, shape index: {}]
  %s5 = inlined_call_operand.hbm [shape: f32[2,8,32], index: 5, kind: output, shape index: {0}]
  %s6 = inlined_call_operand.hbm [shape: f32[2,8,32], index: 6, kind: output, shape index: {1}]
  %7 = xla_tuple %s5, %s6
  %s8 = sld [smem:[#allocation0]]
  $region90: #{tpu_custom_call.1} parent=0
    _
  %s10 = ssub.s32 1, %s8
  %s11 = scalar_select 0, %s10, %s8
  %s13 = sshll.u32 %s0, 4
  %s14 = int_to_ptr.vmem [resolvable:$true] %s13
  %16 = dma.vmem_to_smem %s14, 16, [#allocation5], [#allocation4]
  %18 = dma.done [#allocation4], 16
  %19 = sfence
  $region1: #{tpu_custom_call.1} parent=0
    #allocation6 [shape = 'u8[8192]{0}', space=vmem, size = 0x2000, scoped, tag = 'output window, operand 0']
    #allocation7 [shape = 's32[2]{0}', space=sflag, size = 0x8, scoped, tag = 'scoped memory for tpu_custom_call.1']
    #allocation8 [shape = 'u8[8192]{0}', space=vmem, size = 0x2000, scoped, tag = 'output window, operand 1']
    #allocation9 [shape = 's32[2]{0}', space=sflag, size = 0x8, scoped, tag = 'scoped memory for tpu_custom_call.1']
    %20 = vsyncpa [#allocation7], 0
    %s21 = scalar_lea.sflag [#allocation7], 1
    %22 = vsyncpa %s21, 0
    %23 = vsyncpa [#allocation9], 0
    %s24 = scalar_lea.sflag [#allocation9], 1
    %25 = vsyncpa %s24, 0
    loop: start=0, step=1, limit=4
    $region2: #{tpu_custom_call.1} parent=1 // loop_pre_header
      _
    $region3: #{tpu_custom_call.1} parent=1 // loop_header
      %s27 = sphi 0, %s31
      %p28 = scmp.ge.s32.totalorder %s27, 4
      %s34 = sphi 0, %s46
      %s35 = sphi 0, %s42
      %s36 = sphi 0, %s34
      %s37 = sphi 0, %s35
      %s38 = sphi 0, %s36
      %s39 = sphi 0, %s37
      %s47 = sphi 0, %s47
      %s49 = sphi 0, %s47
      %s50 = sphi 0, %s49
      %s64 = sphi 0, %s50
      %s68 = sphi 0, %s68
      %s70 = sphi 0, %s68
      %s71 = sphi 0, %s70
      %s85 = sphi 0, %s71
      %s89 = sphi 0, %s89
      %s91 = sphi 0, %s89
      %s92 = sphi 0, %s91
      %s106 = sphi 0, %s92
      %s114 = sphi 0, %s116
      %s117 = sphi 0, %s114
      %s118 = sphi 0, %s117
      %s134 = sphi 0, %s118
      %s142 = sphi 0, %s144
      %s145 = sphi 0, %s142
      %s146 = sphi 0, %s145
      %s162 = sphi 0, %s146
    $region4: #{tpu_custom_call.1} parent=1 // loop_header_branch
      %30 = sbr.rel (%p28) target = $region8
    $region5: #{tpu_custom_call.1} parent=1 // loop_body
      %s32 = ssub.s32 %s27, 1
      %s33 = ssub.s32 %s27, 2
      %s40 = sadd.s32 1, %s35
      %p41 = scmp.ge.s32.totalorder %s40, 1
      %s42 = scalar_select %p41, 0, %s40
      %s43 = sadd.s32 1, %s34
      %s44 = scalar_select %p41, %s43, %s34
      %p45 = scmp.ge.s32.totalorder %s44, 2
      %s46 = scalar_select %p45, 0, %s44
      %s48 = sadd.s32 %s47, 1
      %p51 = scmp.eq.s32.totalorder %s27, 1
      %p52 = scmp.ne.s32.totalorder %s47, %s49
      %p53 = scmp.eq.s32.totalorder %s27, 0
      %p54 = por %p52, %p53
      %p55 = scmp.ne.s32.totalorder %s47, %s49
      %p56 = scmp.eq.s32.totalorder %s32, 1
      %p57 = por %p55, %p56
      %p58 = scmp.ne.s32.totalorder %s49, %s50
      %p59 = scmp.eq.s32.totalorder %s32, 0
      %p60 = por %p58, %p59
      %p61 = scmp.ne.s32.totalorder %s49, %s50
      %p62 = scmp.eq.s32.totalorder %s33, 1
      %p63 = por %p61, %p62
      %p65 = scmp.ne.s32.totalorder %s50, %s64
      %p66 = scmp.eq.s32.totalorder %s33, 0
      %p67 = por %p65, %p66
      %s69 = sadd.s32 %s68, 1
      %p72 = scmp.eq.s32.totalorder %s27, 1
      %p73 = scmp.ne.s32.totalorder %s68, %s70
      %p74 = scmp.eq.s32.totalorder %s27, 0
      %p75 = por %p73, %p74
      %p76 = scmp.ne.s32.totalorder %s68, %s70
      %p77 = scmp.eq.s32.totalorder %s32, 1
      %p78 = por %p76, %p77
      %p79 = scmp.ne.s32.totalorder %s70, %s71
      %p80 = scmp.eq.s32.totalorder %s32, 0
      %p81 = por %p79, %p80
      %p82 = scmp.ne.s32.totalorder %s70, %s71
      %p83 = scmp.eq.s32.totalorder %s33, 1
      %p84 = por %p82, %p83
      %p86 = scmp.ne.s32.totalorder %s71, %s85
      %p87 = scmp.eq.s32.totalorder %s33, 0
      %p88 = por %p86, %p87
      %s90 = sadd.s32 %s89, 1
      %p93 = scmp.eq.s32.totalorder %s27, 1
      %p94 = scmp.ne.s32.totalorder %s89, %s91
      %p95 = scmp.eq.s32.totalorder %s27, 0
      %p96 = por %p94, %p95
      %p97 = scmp.ne.s32.totalorder %s89, %s91
      %p98 = scmp.eq.s32.totalorder %s32, 1
      %p99 = por %p97, %p98
      %p100 = scmp.ne.s32.totalorder %s91, %s92
      %p101 = scmp.eq.s32.totalorder %s32, 0
      %p102 = por %p100, %p101
      %p103 = scmp.ne.s32.totalorder %s91, %s92
      %p104 = scmp.eq.s32.totalorder %s33, 1
      %p105 = por %p103, %p104
      %p107 = scmp.ne.s32.totalorder %s92, %s106
      %p108 = scmp.eq.s32.totalorder %s33, 0
      %p109 = por %p107, %p108
      %s110 = ssub.s32 %s34, %s46
      %s111 = ssub.s32 %s35, %s42
      %s112 = sor.u32 %s110, %s111
      %p113 = scmp.eq.s32.totalorder %s112, 0
      %s115 = sadd.s32 %s114, 1
      %s116 = scalar_select %p113, %s114, %s115
      %p119 = pneg %p113
      %p120 = scmp.eq.s32.totalorder %s27, 1
      %p121 = por %p119, %p120
      %p122 = scmp.ne.s32.totalorder %s114, %s117
      %p123 = scmp.eq.s32.totalorder %s27, 0
      %p124 = por %p122, %p123
      %p125 = scmp.ne.s32.totalorder %s114, %s117
      %p126 = scmp.eq.s32.totalorder %s32, 1
      %p127 = por %p125, %p126
      %p128 = scmp.ne.s32.totalorder %s117, %s118
      %p129 = scmp.eq.s32.totalorder %s32, 0
      %p130 = por %p128, %p129
      %p131 = scmp.ne.s32.totalorder %s117, %s118
      %p132 = scmp.eq.s32.totalorder %s33, 1
      %p133 = por %p131, %p132
      %p135 = scmp.ne.s32.totalorder %s118, %s134
      %p136 = scmp.eq.s32.totalorder %s33, 0
      %p137 = por %p135, %p136
      %s138 = ssub.s32 %s34, %s46
      %s139 = ssub.s32 %s35, %s42
      %s140 = sor.u32 %s138, %s139
      %p141 = scmp.eq.s32.totalorder %s140, 0
      %s143 = sadd.s32 %s142, 1
      %s144 = scalar_select %p141, %s142, %s143
      %p147 = pneg %p141
      %p148 = scmp.eq.s32.totalorder %s27, 1
      %p149 = por %p147, %p148
      %p150 = scmp.ne.s32.totalorder %s142, %s145
      %p151 = scmp.eq.s32.totalorder %s27, 0
      %p152 = por %p150, %p151
      %p153 = scmp.ne.s32.totalorder %s142, %s145
      %p154 = scmp.eq.s32.totalorder %s32, 1
      %p155 = por %p153, %p154
      %p156 = scmp.ne.s32.totalorder %s145, %s146
      %p157 = scmp.eq.s32.totalorder %s32, 0
      %p158 = por %p156, %p157
      %p159 = scmp.ne.s32.totalorder %s145, %s146
      %p160 = scmp.eq.s32.totalorder %s33, 1
      %p161 = por %p159, %p160
      %p163 = scmp.ne.s32.totalorder %s146, %s162
      %p164 = scmp.eq.s32.totalorder %s33, 0
      %p165 = por %p163, %p164
      %p166 = scmp.le.s32.totalorder 1, %s27
      %p167 = scmp.lt.s32.totalorder %s27, 3
      %p168 = pnand %p166, %p167
      %p169 = pneg %p168
      // Predicated region
      $region9: #{tpu_custom_call.1} parent=5 // pred_check
        _
      $region10: #{tpu_custom_call.1} parent=5 // pred_check_branch
        %171 = sbr.rel (%p168) target = $region12
      $region11: #{tpu_custom_call.1} parent=5 // pred_region
        %s172 = ssub.s32 %s27, 1
        // Predicated region
        $region13: #{tpu_custom_call.1} parent=11 // pred_check
          %p173 = pneg %p60
        $region14: #{tpu_custom_call.1} parent=11 // pred_check_branch
          %175 = sbr.rel (%p173) target = $region16
        $region15: #{tpu_custom_call.1} parent=11 // pred_region
          _
        $region16: #{tpu_custom_call.1} parent=11 // pred_fallthru
          _
        // Predicated region
        $region17: #{tpu_custom_call.1} parent=11 // pred_check
          %p176 = pneg %p81
        $region18: #{tpu_custom_call.1} parent=11 // pred_check_branch
          %178 = sbr.rel (%p176) target = $region20
        $region19: #{tpu_custom_call.1} parent=11 // pred_region
          _
        $region20: #{tpu_custom_call.1} parent=11 // pred_fallthru
          _
        // Predicated region
        $region21: #{tpu_custom_call.1} parent=11 // pred_check
          %p179 = pneg %p102
        $region22: #{tpu_custom_call.1} parent=11 // pred_check_branch
          %181 = sbr.rel (%p179) target = $region24
        $region23: #{tpu_custom_call.1} parent=11 // pred_region
          _
        $region24: #{tpu_custom_call.1} parent=11 // pred_fallthru
          _
      $region12: #{tpu_custom_call.1} parent=5 // pred_fallthru
        _
      %p182 = scmp.lt.s32.totalorder %s27, 2
      // Predicated region
      $region25: #{tpu_custom_call.1} parent=5 // pred_check
        %p183 = pneg %p182
      $region26: #{tpu_custom_call.1} parent=5 // pred_check_branch
        %185 = sbr.rel (%p183) target = $region28
      $region27: #{tpu_custom_call.1} parent=5 // pred_region
        _
      $region28: #{tpu_custom_call.1} parent=5 // pred_fallthru
        _
      %p186 = scmp.le.s32.totalorder 1, %s27
      %p187 = scmp.lt.s32.totalorder %s27, 3
      %p188 = pnand %p186, %p187
      %p189 = pneg %p188
      // Predicated region
      $region29: #{tpu_custom_call.1} parent=5 // pred_check
        _
      $region30: #{tpu_custom_call.1} parent=5 // pred_check_branch
        %191 = sbr.rel (%p188) target = $region32
      $region31: #{tpu_custom_call.1} parent=5 // pred_region
        %s192 = ssub.s32 %s27, 1
        %p193 = pneg %p60
        %p194 = pneg %p57
        %p195 = pneg %p81
        %p196 = pneg %p78
        %p197 = pneg %p102
        %p198 = pneg %p99
        %p199 = pneg %p130
        %p200 = pneg %p127
        %s201 = sand.u32 %s117, 1
        %s202 = scalar_lea.sflag [#allocation7], %s201
        %s203 = sand.u32 %s117, 1
        %s204 = smul.addr %s203, 8
        %s205 = scalar_lea.vmem [#allocation6], %s204
        %p206 = pneg %p158
        %p207 = pneg %p155
        %s208 = sand.u32 %s145, 1
        %s209 = scalar_lea.sflag [#allocation9], %s208
        %s210 = sand.u32 %s145, 1
        %s211 = smul.addr %s210, 8
        %s212 = scalar_lea.vmem [#allocation8], %s211
        %s213 = smul.u32 %s37, 8
        %s214 = smul.u32 %s36, 8
        %s215 = sadd.s32 %s214, %s213
        loop: start=0, step=1, limit=8
        $region33: #{tpu_custom_call.1} parent=31 // loop_pre_header
          _
        $region34: #{tpu_custom_call.1} parent=31 // loop_header
          %s217 = sphi 0, %s221
          %p218 = scmp.ge.s32.totalorder %s217, 8
        $region35: #{tpu_custom_call.1} parent=31 // loop_header_branch
          %220 = sbr.rel (%p218) target = $region39
        $region36: #{tpu_custom_call.1} parent=31 // loop_body
          %s222 = sadd.s32 %s215, %s217
          %s223 = sld [smem:[#allocation5 + %s222]]
          %s224 = scalar_lea.vmem %s1, %s223
          %s225 = scalar_lea.vmem [#allocation2], %s217
          // Predicated region
          $region40: #{tpu_custom_call.1} parent=36 // pred_check
            _
          $region41: #{tpu_custom_call.1} parent=36 // pred_check_branch
            %227 = sbr.rel target = $region43
          $region42: #{tpu_custom_call.1} parent=36 // pred_region
            // Predicated region
            $region55: #{tpu_custom_call.1} parent=42 // pred_check
              _
            $region56: #{tpu_custom_call.1} parent=42 // pred_check_branch
              %243 = sbr.rel (0) target = $region58
            $region57: #{tpu_custom_call.1} parent=42 // pred_region
              %s245 = ssub.s32 2, 1
              loop: start=0, step=1, limit=1
              $region59: #{tpu_custom_call.1} parent=57 // loop_pre_header
                _
              $region60: #{tpu_custom_call.1} parent=57 // loop_header
                %s247 = sphi 0, %s251
                %p248 = scmp.ge.s32.totalorder %s247, 1
                %s252 = sphi %s224, %s224
                %s253 = sphi %s225, %s225
              $region61: #{tpu_custom_call.1} parent=57 // loop_header_branch
                %250 = sbr.rel (%p248) target = $region65
              $region62: #{tpu_custom_call.1} parent=57 // loop_body
                %v254 = vld [vmem:[%s252] sm:%s245]
                %255 = vst [vmem:[%s253] sm:%s245] %v254
              $region63: #{tpu_custom_call.1} parent=57 // loop_footer
                %s251 = sadd.s32 1, %s247
              $region64: #{tpu_custom_call.1} parent=57 // loop_footer_branch
                %246 = sbr.rel target = $region60
              $region65: #{tpu_custom_call.1} parent=57 // loop_exit
                _
            $region58: #{tpu_custom_call.1} parent=42 // pred_fallthru
              _
          $region43: #{tpu_custom_call.1} parent=36 // pred_fallthru
            _
          // Predicated region
          $region44: #{tpu_custom_call.1} parent=36 // pred_check
            _
          $region45: #{tpu_custom_call.1} parent=36 // pred_check_branch
            %229 = sbr.rel (0) target = $region47
          $region46: #{tpu_custom_call.1} parent=36 // pred_region
            %s231 = ssub.s32 2, 1
            loop: start=0, step=1, limit=1
            $region48: #{tpu_custom_call.1} parent=46 // loop_pre_header
              _
            $region49: #{tpu_custom_call.1} parent=46 // loop_header
              %s233 = sphi 0, %s237
              %p234 = scmp.ge.s32.totalorder %s233, 1
              %s238 = sphi %s224, %s224
              %s239 = sphi %s225, %s225
            $region50: #{tpu_custom_call.1} parent=46 // loop_header_branch
              %236 = sbr.rel (%p234) target = $region54
            $region51: #{tpu_custom_call.1} parent=46 // loop_body
              %v240 = vld [vmem:[%s238] sm:%s231]
              %241 = vst [vmem:[%s239] sm:%s231] %v240
            $region52: #{tpu_custom_call.1} parent=46 // loop_footer
              %s237 = sadd.s32 1, %s233
            $region53: #{tpu_custom_call.1} parent=46 // loop_footer_branch
              %232 = sbr.rel target = $region49
            $region54: #{tpu_custom_call.1} parent=46 // loop_exit
              _
          $region47: #{tpu_custom_call.1} parent=36 // pred_fallthru
            _
          // Predicated region
          $region66: #{tpu_custom_call.1} parent=36 // pred_check
            _
          $region67: #{tpu_custom_call.1} parent=36 // pred_check_branch
            %258 = sbr.rel (0) target = $region69
          $region68: #{tpu_custom_call.1} parent=36 // pred_region
            %259 = vsyncadd [#allocation3], 16
          $region69: #{tpu_custom_call.1} parent=36 // pred_fallthru
            _
        $region37: #{tpu_custom_call.1} parent=31 // loop_footer
          %s221 = sadd.s32 1, %s217
        $region38: #{tpu_custom_call.1} parent=31 // loop_footer_branch
          %216 = sbr.rel target = $region34
        $region39: #{tpu_custom_call.1} parent=31 // loop_exit
          _
        %v260 = vld [vmem:[%s3] sm:$0x1]
        %v262 = vperm.slane %v260, 0
        %v264 = vld [vmem:[%s4] sm:$0x1]
        %v266 = vperm.slane %v264, 0
        %s268 = smul.u32 8, 1
        %s269 = sshll.u32 %s268, 4
        %270 = dma.done [#allocation3], %s269
        %v271 = vld [vmem:[#allocation2] sm:$0xff]
        %s272 = scalar_lea.vmem %s2, %s213
        %v273 = vld [vmem:[%s272] sm:$0xff]
        %v274 = vadd.f32 %v271, %v273
        %vm275 = vcmask 261120
        %v276 = vsel %vm275, %v274, 0.0
        %277 = vadd.xlane.f32.xlu0 %v276
        %v278 = vpop.xlane.xlu0 %277
        %v279 = vrcp.pop 32.0
        %v280 = vmul.f32 32.0, %v279
        %v281 = vsub.f32 1.0, %v280
        %v282 = vmul.f32 %v279, %v281
        %v283 = vadd.f32 %v279, %v282
        %vm284 = vweird.f32 %v279
        %v285 = vsel %vm284, %v279, %v283
        %v286 = vmul.f32 %v278, %v285
        %v287 = vsub.f32 %v274, %v286
        %v288 = vmul.f32 %v287, %v287
        %v289 = vsel %vm275, %v288, 0.0
        %290 = vadd.xlane.f32.xlu0 %v289
        %v291 = vpop.xlane.xlu0 %290
        %v292 = vmul.f32 %v291, %v285
        %v293 = vadd.f32 %v292, 1e-12
        %v294 = vrsqrt.pop %v293
        %v295 = vmul.f32 %v294, %v293
        %v296 = vmul.f32 %v295, %v294
        %v297 = vmul.f32 0.5, %v296
        %v298 = vsub.f32 1.5, %v297
        %v299 = vmul.f32 %v294, %v298
        %vm300 = vweird.f32 %v293
        %vm301 = vweird.f32 %v294
        %vm302 = vmor %vm300, %vm301
        %v303 = vsel %vm302, %v294, %v299
        %v304 = vmul.f32 %v287, %v303
        %v305 = vmul.f32 %v304, %v262
        %v306 = vadd.f32 %v305, %v266
        %307 = vst.msk [vmem:[%s205] sm:$0xff] %vm275, %v306
        %308 = vst.msk [vmem:[%s212] sm:$0xff] %vm275, %v271
        %s309 = sand.u32 %s117, 1
        %s310 = scalar_lea.sflag [#allocation7], %s309
        %s311 = sand.u32 %s117, 1
        %s312 = smul.addr %s311, 8
        %s313 = scalar_lea.vmem [#allocation6], %s312
        %s314 = sand.u32 %s145, 1
        %s315 = scalar_lea.sflag [#allocation9], %s314
        %s316 = sand.u32 %s145, 1
        %s317 = smul.addr %s316, 8
        %s318 = scalar_lea.vmem [#allocation8], %s317
        // Predicated region
        $region70: #{tpu_custom_call.1} parent=31 // pred_check
          %p319 = pneg %p127
        $region71: #{tpu_custom_call.1} parent=31 // pred_check_branch
          %321 = sbr.rel (%p319) target = $region73
        $region72: #{tpu_custom_call.1} parent=31 // pred_region
          %323 = vsyncadd %s310, 0
          %s324 = sadd.s32 %s37, %s36
          %s325 = smul.addr %s324, 8
          %s326 = scalar_lea.hbm %s5, %s325
          %s328 = sshll.u32 %s313, 4
          %s329 = int_to_ptr.vmem [resolvable:$true] %s328
          %s330 = sshll.u32 %s326, 4
          %s331 = int_to_ptr.hbm [resolvable:$true] %s330
          %333 = dma.vmem_to_hbm [thread:$0]  %s329, 128, %s331, %s310
        $region73: #{tpu_custom_call.1} parent=31 // pred_fallthru
          _
        // Predicated region
        $region74: #{tpu_custom_call.1} parent=31 // pred_check
          %p334 = pneg %p155
        $region75: #{tpu_custom_call.1} parent=31 // pred_check_branch
          %336 = sbr.rel (%p334) target = $region77
        $region76: #{tpu_custom_call.1} parent=31 // pred_region
          %338 = vsyncadd %s315, 0
          %s339 = sadd.s32 %s37, %s36
          %s340 = smul.addr %s339, 8
          %s341 = scalar_lea.hbm %s6, %s340
          %s343 = sshll.u32 %s318, 4
          %s344 = int_to_ptr.vmem [resolvable:$true] %s343
          %s345 = sshll.u32 %s341, 4
          %s346 = int_to_ptr.hbm [resolvable:$true] %s345
          %348 = dma.vmem_to_hbm [thread:$0]  %s344, 128, %s346, %s315
        $region77: #{tpu_custom_call.1} parent=31 // pred_fallthru
          _
      $region32: #{tpu_custom_call.1} parent=5 // pred_fallthru
        _
      %p349 = scmp.le.s32.totalorder 2, %s27
      // Predicated region
      $region78: #{tpu_custom_call.1} parent=5 // pred_check
        %p350 = pneg %p349
      $region79: #{tpu_custom_call.1} parent=5 // pred_check_branch
        %352 = sbr.rel (%p350) target = $region81
      $region80: #{tpu_custom_call.1} parent=5 // pred_region
        %s353 = ssub.s32 %s27, 2
        // Predicated region
        $region82: #{tpu_custom_call.1} parent=80 // pred_check
          %p354 = pneg %p133
        $region83: #{tpu_custom_call.1} parent=80 // pred_check_branch
          %356 = sbr.rel (%p354) target = $region85
        $region84: #{tpu_custom_call.1} parent=80 // pred_region
          %s357 = sand.u32 %s118, 1
          %s358 = scalar_lea.sflag [#allocation7], %s357
          %s359 = sand.u32 %s118, 1
          %s360 = smul.addr %s359, 8
          %s361 = scalar_lea.vmem [#allocation6], %s360
          %363 = dma.done %s358, 128
        $region85: #{tpu_custom_call.1} parent=80 // pred_fallthru
          _
        // Predicated region
        $region86: #{tpu_custom_call.1} parent=80 // pred_check
          %p364 = pneg %p161
        $region87: #{tpu_custom_call.1} parent=80 // pred_check_branch
          %366 = sbr.rel (%p364) target = $region89
        $region88: #{tpu_custom_call.1} parent=80 // pred_region
          %s367 = sand.u32 %s146, 1
          %s368 = scalar_lea.sflag [#allocation9], %s367
          %s369 = sand.u32 %s146, 1
          %s370 = smul.addr %s369, 8
          %s371 = scalar_lea.vmem [#allocation8], %s370
          %373 = dma.done %s368, 128
        $region89: #{tpu_custom_call.1} parent=80 // pred_fallthru
          _
      $region81: #{tpu_custom_call.1} parent=5 // pred_fallthru
        _
    $region6: #{tpu_custom_call.1} parent=1 // loop_footer
      %s31 = sadd.s32 1, %s27
    $region7: #{tpu_custom_call.1} parent=1 // loop_footer_branch
      %26 = sbr.rel target = $region3
    $region8: #{tpu_custom_call.1} parent=1 // loop_exit
      _
    %374 = vsyncpa [#allocation7], 1
    %s375 = scalar_lea.sflag [#allocation7], 1
    %376 = vsyncpa %s375, 1
    %377 = vsyncpa [#allocation9], 1
    %s378 = scalar_lea.sflag [#allocation9], 1
    %379 = vsyncpa %s378, 1
  %380 = vsyncmov [#allocation3]
  %s381 = vpop.sfrf %380
  %p382 = scmp.eq.s32.totalorder %s381, 0
  %p383 = pneg %p382
  %385 = shalt.err (%p383)

</llo_original>
